<compile_context>
chip_gen: v6e
topology: v6e:2x2x1
jax: 0.10.0
libtpu: 0.0.40
codegen_flags: <defaults>
</compile_context>

<pallas_src>
import jax
import jax.numpy as jnp
from jax.experimental import pallas as pl
from jax.experimental.pallas import tpu as pltpu


# ---------------------------------------------------------------------------
# Kernel: fused 4-layer MLP on one (tb, 50) batch tile, batch-major.
# ---------------------------------------------------------------------------
def _mlp_kernel(x_ref,
                w1_ref, b1_ref,
                w2_ref, b2_ref,
                w3_ref, b3_ref,
                w4_ref, b4_ref,
                o_ref):
    # fc1 + ReLU: (tb, 50) @ (50, 10) -> (tb, 10), f32 accumulation.
    h = jnp.dot(x_ref[...], w1_ref[...], preferred_element_type=jnp.float32)
    h = jnp.maximum(h + b1_ref[...], 0.0)
    # fc2 + ReLU: (tb, 10) @ (10, 20) -> (tb, 20)
    h = jnp.dot(h, w2_ref[...], preferred_element_type=jnp.float32)
    h = jnp.maximum(h + b2_ref[...], 0.0)
    # fc3 + ReLU: (tb, 20) @ (20, 10) -> (tb, 10)
    h = jnp.dot(h, w3_ref[...], preferred_element_type=jnp.float32)
    h = jnp.maximum(h + b3_ref[...], 0.0)
    # fc4 (no activation): (tb, 10) @ (10, 2) -> (tb, 2)
    h = jnp.dot(h, w4_ref[...], preferred_element_type=jnp.float32)
    o_ref[...] = (h + b4_ref[...]).astype(o_ref.dtype)


# ---------------------------------------------------------------------------
# Tiling policy.
# ---------------------------------------------------------------------------
def _round_up(x, m):
    return ((x + m - 1) // m) * m


def _min_grid_steps():
    """Prefer >= 2 grid steps only on parts where a 'parallel' grid axis is
    sharded across two TensorCores (v7x, and megacore v4/v5p). On single-TC
    v5e/v6e extra steps only add per-step overhead."""
    try:
        kind = jax.devices()[0].device_kind.lower()
    except Exception:  # pragma: no cover
        return 1
    if "v7" in kind or "v4" in kind or "v5p" in kind:
        return 2
    return 1


def _choose_tiling(B, tb=None, cap=8192):
    """Return (tb, n_steps, B_padded): tb is a multiple of 128 (sublane-aligned
    and keeps tiles big), n_steps * tb == B_padded >= B."""
    if tb is not None:
        if tb % 128 != 0:
            raise ValueError(f"tb={tb} must be a multiple of 128")
        n_steps = max(1, -(-B // tb))
        return tb, n_steps, n_steps * tb

    b128 = _round_up(max(B, 1), 128)
    n_steps = max(_min_grid_steps(), -(-b128 // cap))
    n_steps = min(n_steps, b128 // 128)        # at least 128 rows per step
    tb = _round_up(-(-b128 // n_steps), 128)
    return tb, n_steps, n_steps * tb


# ---------------------------------------------------------------------------
# Wrapper.
# ---------------------------------------------------------------------------
def abstrct_link_network(x, params, *, tb=None):
    """Forward pass of ABSTRCT_LinkNetwork.

    x:      (B, 50), batch-major, read in its storage dtype (no wrapper cast).
    params: torch-layout weights w{1..4} of shape (out, in), biases b{1..4}
            of shape (out,).
    Returns (B, 2) float32.
    """
    B, F = x.shape
    assert F == 50, "ABSTRCT_LinkNetwork expects 50 input features"

    tb, n_steps, b_pad = _choose_tiling(B, tb=tb)

    # One-time, ~3 KB of layout plumbing on the weights (NOT on x).
    w1 = params["w1"].T.astype(x.dtype)            # (50, 10), matches x dtype
    w2 = params["w2"].T.astype(jnp.float32)        # (10, 20)
    w3 = params["w3"].T.astype(jnp.float32)        # (20, 10)
    w4 = params["w4"].T.astype(jnp.float32)        # (10, 2)
    b1 = params["b1"].reshape(1, -1).astype(jnp.float32)
    b2 = params["b2"].reshape(1, -1).astype(jnp.float32)
    b3 = params["b3"].reshape(1, -1).astype(jnp.float32)
    b4 = params["b4"].reshape(1, -1).astype(jnp.float32)

    # Pad the batch up to n_steps * tb (only when B is not already aligned).
    x_in = x if b_pad == B else jnp.pad(x, ((0, b_pad - B), (0, 0)))

    # VMEM budget: (tb, 50) and (tb, 2) tiles both lane-pad to (tb, 128).
    x_bufs = 3 if n_steps >= 3 else 2
    lane_bytes = tb * 128
    est_vmem = (x_bufs * lane_bytes * jnp.dtype(x.dtype).itemsize
                + 2 * lane_bytes * 4            # output double-buffer, f32
                + (64 << 10))                   # weights/biases + slack
    vmem_limit = min(48 << 20, max(16 << 20, int(est_vmem * 3 // 2)))

    # Weights/biases stay resident in VMEM across grid steps (constant maps).
    const = lambda shape: pl.BlockSpec(shape, lambda i: (0, 0))

    x_spec_kwargs = {}
    if n_steps >= 3:
        # Compute per step is near zero; a third input buffer hides DMA issue
        # latency for < 1 MiB extra VMEM.
        x_spec_kwargs["pipeline_mode"] = pl.Buffered(3)
    x_spec = pl.BlockSpec((tb, 50), lambda i: (i, 0), **x_spec_kwargs)

    itemsize = jnp.dtype(x.dtype).itemsize
    weight_bytes = sum(int(a.size) * 4 for a in (w2, w3, w4, b1, b2, b3, b4))
    weight_bytes += int(w1.size) * itemsize
    cost = pl.CostEstimate(
        flops=2 * (50 * 10 + 10 * 20 + 20 * 10 + 10 * 2) * b_pad,
        transcendentals=0,
        bytes_accessed=b_pad * 50 * itemsize + b_pad * 2 * 4 + weight_bytes,
    )

    out = pl.pallas_call(
        _mlp_kernel,
        out_shape=jax.ShapeDtypeStruct((b_pad, 2), jnp.float32),
        grid=(n_steps,),
        in_specs=[
            x_spec,
            const(w1.shape), const(b1.shape),
            const(w2.shape), const(b2.shape),
            const(w3.shape), const(b3.shape),
            const(w4.shape), const(b4.shape),
        ],
        out_specs=pl.BlockSpec((tb, 2), lambda i: (i, 0)),
        compiler_params=pltpu.CompilerParams(
            dimension_semantics=("parallel",),
            vmem_limit_bytes=vmem_limit,
        ),
        cost_estimate=cost,
    )(x_in, w1, b1, w2, b2, w3, b3, w4, b4)

    return out if b_pad == B else out[:B]


# ---------------------------------------------------------------------------
# Deterministic synthetic params (shapes match the nn.Linear layers, torch
# (out_features, in_features) weight layout, (out_features,) bias).
# ---------------------------------------------------------------------------
def init_params(key):
    dims = [(50, 10), (10, 20), (20, 10), (10, 2)]
    params = {}
    for idx, (fan_in, fan_out) in enumerate(dims, start=1):
        key, kw, kb = jax.random.split(key, 3)
        bound = 1.0 / jnp.sqrt(fan_in)
        params[f"w{idx}"] = jax.random.uniform(
            kw, (fan_out, fan_in), jnp.float32, -bound, bound)
        params[f"b{idx}"] = jax.random.uniform(
            kb, (fan_out,), jnp.float32, -bound, bound)
    return params


def _reference(x, p):
    h = jnp.maximum(x @ p["w1"].T + p["b1"], 0.0)
    h = jnp.maximum(h @ p["w2"].T + p["b2"], 0.0)
    h = jnp.maximum(h @ p["w3"].T + p["b3"], 0.0)
    return h @ p["w4"].T + p["b4"]


if __name__ == "__main__":
    key = jax.random.PRNGKey(0)
    kx, kx2, kp = jax.random.split(key, 3)

    params = init_params(kp)

    # Small batch: pads 8 -> 128, single tile, output sliced back to (8, 2).
    B = 8
    x = jax.random.normal(kx, (B, 50), jnp.float32)
    out = jax.block_until_ready(abstrct_link_network(x, params))
    ref = _reference(x, params)
    assert out.shape == (B, 2)
    assert jnp.allclose(out, ref, atol=1e-5, rtol=1e-5)

    # Unaligned multi-tile batch with an explicit tile: 640 pads to 768 with
    # tb=256 -> 3 grid steps, exercising the Buffered(3) x pipeline and the
    # pad/slice path.
    B2 = 640
    x2 = jax.random.normal(kx2, (B2, 50), jnp.float32)
    out2 = jax.block_until_ready(abstrct_link_network(x2, params, tb=256))
    ref2 = _reference(x2, params)
    assert out2.shape == (B2, 2)
    assert jnp.allclose(out2, ref2, atol=1e-5, rtol=1e-5)

    print("KERNEL_OK")
</pallas_src>

<mosaic_0001>
module attributes {stable_mosaic.version = 11 : i64} {
  func.func @_mlp_kernel(%arg0: i32, %arg1: memref<128x50xf32, #tpu.memory_space<vmem>>, %arg2: memref<50x10xf32, #tpu.memory_space<vmem>>, %arg3: memref<1x10xf32, #tpu.memory_space<vmem>>, %arg4: memref<10x20xf32, #tpu.memory_space<vmem>>, %arg5: memref<1x20xf32, #tpu.memory_space<vmem>>, %arg6: memref<20x10xf32, #tpu.memory_space<vmem>>, %arg7: memref<1x10xf32, #tpu.memory_space<vmem>>, %arg8: memref<10x2xf32, #tpu.memory_space<vmem>>, %arg9: memref<1x2xf32, #tpu.memory_space<vmem>>, %arg10: memref<128x2xf32, #tpu.memory_space<vmem>>) attributes {dimension_semantics = [#tpu.dimension_semantics<parallel>], iteration_bounds = array<i64: 1>, scalar_prefetch = 0 : i64, scratch_operands = 0 : i64, tpu.core_type = #tpu.core_type<tc>, window_params = [{transform_indices = @transform_0, window_bounds = array<i64: 128, 50>}, {pipeline_mode = #tpu.pipeline_mode<synchronous>, transform_indices = @transform_1, window_bounds = array<i64: 50, 10>}, {pipeline_mode = #tpu.pipeline_mode<synchronous>, transform_indices = @transform_2, window_bounds = array<i64: 1, 10>}, {pipeline_mode = #tpu.pipeline_mode<synchronous>, transform_indices = @transform_3, window_bounds = array<i64: 10, 20>}, {pipeline_mode = #tpu.pipeline_mode<synchronous>, transform_indices = @transform_4, window_bounds = array<i64: 1, 20>}, {pipeline_mode = #tpu.pipeline_mode<synchronous>, transform_indices = @transform_5, window_bounds = array<i64: 20, 10>}, {pipeline_mode = #tpu.pipeline_mode<synchronous>, transform_indices = @transform_6, window_bounds = array<i64: 1, 10>}, {pipeline_mode = #tpu.pipeline_mode<synchronous>, transform_indices = @transform_7, window_bounds = array<i64: 10, 2>}, {pipeline_mode = #tpu.pipeline_mode<synchronous>, transform_indices = @transform_8, window_bounds = array<i64: 1, 2>}, {transform_indices = @transform_9, window_bounds = array<i64: 128, 2>}]} {
    %c0 = arith.constant 0 : index
    %c0_0 = arith.constant 0 : index
    %0 = vector.load %arg1[%c0, %c0_0] : memref<128x50xf32, #tpu.memory_space<vmem>>, vector<128x50xf32>
    %c0_1 = arith.constant 0 : index
    %c0_2 = arith.constant 0 : index
    %1 = vector.load %arg2[%c0_1, %c0_2] : memref<50x10xf32, #tpu.memory_space<vmem>>, vector<50x10xf32>
    %cst = arith.constant dense<0.000000e+00> : vector<128x10xf32>
    %2 = tpu.matmul %0, %1, %cst {dimension_numbers = #tpu.dot_dimension_numbers<[1], [0], [0], [1], [0, 0, 1, 1], [], []>} : vector<128x50xf32>, vector<50x10xf32>, vector<128x10xf32> -> vector<128x10xf32>
    %c0_3 = arith.constant 0 : index
    %c0_4 = arith.constant 0 : index
    %3 = vector.load %arg3[%c0_3, %c0_4] : memref<1x10xf32, #tpu.memory_space<vmem>>, vector<1x10xf32>
    %4 = vector.broadcast %3 : vector<1x10xf32> to vector<128x10xf32>
    %5 = arith.addf %2, %4 : vector<128x10xf32>
    %cst_5 = arith.constant 0.000000e+00 : f32
    %6 = vector.broadcast %cst_5 : f32 to vector<128x10xf32>
    %7 = arith.maximumf %5, %6 : vector<128x10xf32>
    %c0_6 = arith.constant 0 : index
    %c0_7 = arith.constant 0 : index
    %8 = vector.load %arg4[%c0_6, %c0_7] : memref<10x20xf32, #tpu.memory_space<vmem>>, vector<10x20xf32>
    %cst_8 = arith.constant dense<0.000000e+00> : vector<128x20xf32>
    %9 = tpu.matmul %7, %8, %cst_8 {dimension_numbers = #tpu.dot_dimension_numbers<[1], [0], [0], [1], [0, 0, 1, 1], [], []>} : vector<128x10xf32>, vector<10x20xf32>, vector<128x20xf32> -> vector<128x20xf32>
    %c0_9 = arith.constant 0 : index
    %c0_10 = arith.constant 0 : index
    %10 = vector.load %arg5[%c0_9, %c0_10] : memref<1x20xf32, #tpu.memory_space<vmem>>, vector<1x20xf32>
    %11 = vector.broadcast %10 : vector<1x20xf32> to vector<128x20xf32>
    %12 = arith.addf %9, %11 : vector<128x20xf32>
    %cst_11 = arith.constant 0.000000e+00 : f32
    %13 = vector.broadcast %cst_11 : f32 to vector<128x20xf32>
    %14 = arith.maximumf %12, %13 : vector<128x20xf32>
    %c0_12 = arith.constant 0 : index
    %c0_13 = arith.constant 0 : index
    %15 = vector.load %arg6[%c0_12, %c0_13] : memref<20x10xf32, #tpu.memory_space<vmem>>, vector<20x10xf32>
    %cst_14 = arith.constant dense<0.000000e+00> : vector<128x10xf32>
    %16 = tpu.matmul %14, %15, %cst_14 {dimension_numbers = #tpu.dot_dimension_numbers<[1], [0], [0], [1], [0, 0, 1, 1], [], []>} : vector<128x20xf32>, vector<20x10xf32>, vector<128x10xf32> -> vector<128x10xf32>
    %c0_15 = arith.constant 0 : index
    %c0_16 = arith.constant 0 : index
    %17 = vector.load %arg7[%c0_15, %c0_16] : memref<1x10xf32, #tpu.memory_space<vmem>>, vector<1x10xf32>
    %18 = vector.broadcast %17 : vector<1x10xf32> to vector<128x10xf32>
    %19 = arith.addf %16, %18 : vector<128x10xf32>
    %cst_17 = arith.constant 0.000000e+00 : f32
    %20 = vector.broadcast %cst_17 : f32 to vector<128x10xf32>
    %21 = arith.maximumf %19, %20 : vector<128x10xf32>
    %c0_18 = arith.constant 0 : index
    %c0_19 = arith.constant 0 : index
    %22 = vector.load %arg8[%c0_18, %c0_19] : memref<10x2xf32, #tpu.memory_space<vmem>>, vector<10x2xf32>
    %cst_20 = arith.constant dense<0.000000e+00> : vector<128x2xf32>
    %23 = tpu.matmul %21, %22, %cst_20 {dimension_numbers = #tpu.dot_dimension_numbers<[1], [0], [0], [1], [0, 0, 1, 1], [], []>} : vector<128x10xf32>, vector<10x2xf32>, vector<128x2xf32> -> vector<128x2xf32>
    %c0_21 = arith.constant 0 : index
    %c0_22 = arith.constant 0 : index
    %24 = vector.load %arg9[%c0_21, %c0_22] : memref<1x2xf32, #tpu.memory_space<vmem>>, vector<1x2xf32>
    %25 = vector.broadcast %24 : vector<1x2xf32> to vector<128x2xf32>
    %26 = arith.addf %23, %25 : vector<128x2xf32>
    %c0_23 = arith.constant 0 : index
    %c0_24 = arith.constant 0 : index
    %27 = vector.load %arg10[%c0_23, %c0_24] : memref<128x2xf32, #tpu.memory_space<vmem>>, vector<128x2xf32>
    tpu.vector_store %arg10[%c0_23, %c0_24], %26 {strides = array<i32>} : memref<128x2xf32, #tpu.memory_space<vmem>>, vector<128x2xf32>,
    return
  }
  func.func @transform_0(%arg0: i32) -> (i32, i32) {
    %c0_i32 = arith.constant 0 : i32
    %c0_i32_0 = arith.constant 0 : i32
    return %arg0, %c0_i32 : i32, i32
  }
  func.func @transform_1(%arg0: i32) -> (i32, i32) {
    %c0_i32 = arith.constant 0 : i32
    %c0_i32_0 = arith.constant 0 : i32
    %c0_i32_1 = arith.constant 0 : i32
    return %c0_i32, %c0_i32_0 : i32, i32
  }
  func.func @transform_2(%arg0: i32) -> (i32, i32) {
    %c0_i32 = arith.constant 0 : i32
    %c0_i32_0 = arith.constant 0 : i32
    %c0_i32_1 = arith.constant 0 : i32
    return %c0_i32, %c0_i32_0 : i32, i32
  }
  func.func @transform_3(%arg0: i32) -> (i32, i32) {
    %c0_i32 = arith.constant 0 : i32
    %c0_i32_0 = arith.constant 0 : i32
    %c0_i32_1 = arith.constant 0 : i32
    return %c0_i32, %c0_i32_0 : i32, i32
  }
  func.func @transform_4(%arg0: i32) -> (i32, i32) {
    %c0_i32 = arith.constant 0 : i32
    %c0_i32_0 = arith.constant 0 : i32
    %c0_i32_1 = arith.constant 0 : i32
    return %c0_i32, %c0_i32_0 : i32, i32
  }
  func.func @transform_5(%arg0: i32) -> (i32, i32) {
    %c0_i32 = arith.constant 0 : i32
    %c0_i32_0 = arith.constant 0 : i32
    %c0_i32_1 = arith.constant 0 : i32
    return %c0_i32, %c0_i32_0 : i32, i32
  }
  func.func @transform_6(%arg0: i32) -> (i32, i32) {
    %c0_i32 = arith.constant 0 : i32
    %c0_i32_0 = arith.constant 0 : i32
    %c0_i32_1 = arith.constant 0 : i32
    return %c0_i32, %c0_i32_0 : i32, i32
  }
  func.func @transform_7(%arg0: i32) -> (i32, i32) {
    %c0_i32 = arith.constant 0 : i32
    %c0_i32_0 = arith.constant 0 : i32
    %c0_i32_1 = arith.constant 0 : i32
    return %c0_i32, %c0_i32_0 : i32, i32
  }
  func.func @transform_8(%arg0: i32) -> (i32, i32) {
    %c0_i32 = arith.constant 0 : i32
    %c0_i32_0 = arith.constant 0 : i32
    %c0_i32_1 = arith.constant 0 : i32
    return %c0_i32, %c0_i32_0 : i32, i32
  }
  func.func @transform_9(%arg0: i32) -> (i32, i32) {
    %c0_i32 = arith.constant 0 : i32
    %c0_i32_0 = arith.constant 0 : i32
    return %arg0, %c0_i32 : i32, i32
  }
}

</mosaic_0001>

<llo_original>
// kernel: tpu_custom_call.1
$region0: #{tpu_custom_call.1}
  #allocation0 [shape = 'u32[]', space=smem, size = 0x4, offset = 0x4, fixed_abs, tag = 'smem constant byte address 0x4 - core index']
  #allocation1 [shape = 'u32[144,128]{1,0:T(1,128)}', space=vmem, size = 0x12000, scoped, tag = 'internal scratch']
  %s0 = inlined_call_operand.vmem [shape: f32[128,50], index: 0, kind: input, shape index: {}]
  %s1 = inlined_call_operand.vmem [shape: f32[50,10], index: 1, kind: input, shape index: {}]
  %s2 = inlined_call_operand.vmem [shape: f32[1,10], index: 2, kind: input, shape index: {}]
  %s3 = inlined_call_operand.vmem [shape: f32[10,20], index: 3, kind: input, shape index: {}]
  %s4 = inlined_call_operand.vmem [shape: f32[1,20], index: 4, kind: input, shape index: {}]
  %s5 = inlined_call_operand.vmem [shape: f32[20,10], index: 5, kind: input, shape index: {}]
  %s6 = inlined_call_operand.vmem [shape: f32[1,10], index: 6, kind: input, shape index: {}]
  %s7 = inlined_call_operand.vmem [shape: f32[10,2], index: 7, kind: input, shape index: {}]
  %s8 = inlined_call_operand.vmem [shape: f32[1,2], index: 8, kind: input, shape index: {}]
  %s9 = inlined_call_operand.vmem [shape: f32[128,2], index: 9, kind: output, shape index: {}]
  %s10 = sld [smem:[#allocation0]]
  $region46: #{tpu_custom_call.1} parent=0
    _
  %s12 = ssub.s32 1, %s10
  %s13 = scalar_select 0, %s12, %s10
  // Predicated region
  $region2: #{tpu_custom_call.1} parent=0 // pred_check
    _
  $region3: #{tpu_custom_call.1} parent=0 // pred_check_branch
    %15 = sbr.rel (0) target = $region5
  $region4: #{tpu_custom_call.1} parent=0 // pred_region
    _
  $region5: #{tpu_custom_call.1} parent=0 // pred_fallthru
    _
  // Predicated region
  $region6: #{tpu_custom_call.1} parent=0 // pred_check
    _
  $region7: #{tpu_custom_call.1} parent=0 // pred_check_branch
    %17 = sbr.rel (0) target = $region9
  $region8: #{tpu_custom_call.1} parent=0 // pred_region
    _
  $region9: #{tpu_custom_call.1} parent=0 // pred_fallthru
    _
  // Predicated region
  $region10: #{tpu_custom_call.1} parent=0 // pred_check
    _
  $region11: #{tpu_custom_call.1} parent=0 // pred_check_branch
    %19 = sbr.rel (0) target = $region13
  $region12: #{tpu_custom_call.1} parent=0 // pred_region
    _
  $region13: #{tpu_custom_call.1} parent=0 // pred_fallthru
    _
  // Predicated region
  $region14: #{tpu_custom_call.1} parent=0 // pred_check
    _
  $region15: #{tpu_custom_call.1} parent=0 // pred_check_branch
    %21 = sbr.rel (0) target = $region17
  $region16: #{tpu_custom_call.1} parent=0 // pred_region
    _
  $region17: #{tpu_custom_call.1} parent=0 // pred_fallthru
    _
  // Predicated region
  $region18: #{tpu_custom_call.1} parent=0 // pred_check
    _
  $region19: #{tpu_custom_call.1} parent=0 // pred_check_branch
    %23 = sbr.rel (0) target = $region21
  $region20: #{tpu_custom_call.1} parent=0 // pred_region
    _
  $region21: #{tpu_custom_call.1} parent=0 // pred_fallthru
    _
  // Predicated region
  $region22: #{tpu_custom_call.1} parent=0 // pred_check
    _
  $region23: #{tpu_custom_call.1} parent=0 // pred_check_branch
    %25 = sbr.rel (0) target = $region25
  $region24: #{tpu_custom_call.1} parent=0 // pred_region
    _
  $region25: #{tpu_custom_call.1} parent=0 // pred_fallthru
    _
  // Predicated region
  $region26: #{tpu_custom_call.1} parent=0 // pred_check
    _
  $region27: #{tpu_custom_call.1} parent=0 // pred_check_branch
    %27 = sbr.rel (0) target = $region29
  $region28: #{tpu_custom_call.1} parent=0 // pred_region
    _
  $region29: #{tpu_custom_call.1} parent=0 // pred_fallthru
    _
  // Predicated region
  $region30: #{tpu_custom_call.1} parent=0 // pred_check
    _
  $region31: #{tpu_custom_call.1} parent=0 // pred_check_branch
    %29 = sbr.rel (0) target = $region33
  $region32: #{tpu_custom_call.1} parent=0 // pred_region
    _
  $region33: #{tpu_custom_call.1} parent=0 // pred_fallthru
    _
  // Predicated region
  $region34: #{tpu_custom_call.1} parent=0 // pred_check
    _
  $region35: #{tpu_custom_call.1} parent=0 // pred_check_branch
    %31 = sbr.rel (0) target = $region37
  $region36: #{tpu_custom_call.1} parent=0 // pred_region
    _
  $region37: #{tpu_custom_call.1} parent=0 // pred_fallthru
    _
  %v32 = vld [vmem:[%s0] sm:$0xff]
  %v33 = vld [vmem:[%s0 + $0x8] sm:$0xff]
  %v34 = vld [vmem:[%s0 + $0x10] sm:$0xff]
  %v35 = vld [vmem:[%s0 + $0x18] sm:$0xff]
  %v36 = vld [vmem:[%s0 + $0x20] sm:$0xff]
  %v37 = vld [vmem:[%s0 + $0x28] sm:$0xff]
  %v38 = vld [vmem:[%s0 + $0x30] sm:$0xff]
  %v39 = vld [vmem:[%s0 + $0x38] sm:$0xff]
  %v40 = vld [vmem:[%s0 + $0x40] sm:$0xff]
  %v41 = vld [vmem:[%s0 + $0x48] sm:$0xff]
  %v42 = vld [vmem:[%s0 + $0x50] sm:$0xff]
  %v43 = vld [vmem:[%s0 + $0x58] sm:$0xff]
  %v44 = vld [vmem:[%s0 + $0x60] sm:$0xff]
  %v45 = vld [vmem:[%s0 + $0x68] sm:$0xff]
  %v46 = vld [vmem:[%s0 + $0x70] sm:$0xff]
  %v47 = vld [vmem:[%s0 + $0x78] sm:$0xff]
  %v48 = vld [vmem:[%s1] sm:$0xff]
  %v49 = vld [vmem:[%s1 + $0x8] sm:$0xff]
  %v50 = vld [vmem:[%s1 + $0x10] sm:$0xff]
  %v51 = vld [vmem:[%s1 + $0x18] sm:$0xff]
  %v52 = vld [vmem:[%s1 + $0x20] sm:$0xff]
  %v53 = vld [vmem:[%s1 + $0x28] sm:$0xff]
  %v54 = vld [vmem:[%s1 + $0x30] sm:$0x3]
  %v55 = vld [vmem:[%s2] sm:$0x1]
  %v57 = vlaneseq
  %v58 = vshrl.u32 %v57, 7
  %v59 = vsub.s32 0, %v58
  %v60 = vrot.slane %v55, %v59
  %vm62 = vcmask 408576
  %v64 = vsel %vm62, %v32, 0
  %v67 = vsel %vm62, %v33, 0
  %v70 = vsel %vm62, %v34, 0
  %v73 = vsel %vm62, %v35, 0
  %v76 = vsel %vm62, %v36, 0
  %v79 = vsel %vm62, %v37, 0
  %v82 = vsel %vm62, %v38, 0
  %v85 = vsel %vm62, %v39, 0
  %v88 = vsel %vm62, %v40, 0
  %v91 = vsel %vm62, %v41, 0
  %v94 = vsel %vm62, %v42, 0
  %v97 = vsel %vm62, %v43, 0
  %v100 = vsel %vm62, %v44, 0
  %v103 = vsel %vm62, %v45, 0
  %v106 = vsel %vm62, %v46, 0
  %v109 = vsel %vm62, %v47, 0
  %vm111 = vcmask 1041408
  %v113 = vsel %vm111, %v54, 0
  %115 = vmatprep.subr.mxu0 0.0
  %116 = vmatpush1.msra.mxu0 0.0
  %117 = vmatprep.subr.mxu0 0.0
  %118 = vmatpush1.msra.mxu0 0.0
  %119 = vmatprep.subr.mxu0 0.0
  %120 = vmatpush1.msra.mxu0 0.0
  %121 = vmatprep.subr.mxu0 0.0
  %122 = vmatpush1.msra.mxu0 0.0
  %123 = vmatprep.subr.mxu0 0.0
  %124 = vmatpush1.msra.mxu0 0.0
  %125 = vmatprep.subr.mxu0 0.0
  %126 = vmatpush1.msra.mxu0 0.0
  %127 = vmatprep.subr.mxu0 0.0
  %128 = vmatpush1.msra.mxu0 0.0
  %129 = vmatprep.subr.mxu0 0.0
  %130 = vmatpush1.msra.mxu0 0.0
  %131 = vmatprep.subr.mxu0 0.0
  %132 = vmatpush1.msra.mxu0 0.0
  %133 = vmatprep.subr.mxu0 0.0
  %134 = vmatpush1.msra.mxu0 %v113
  %135 = vmatprep.subr.mxu0 0.0
  %136 = vmatpush1.msra.mxu0 %v53
  %137 = vmatprep.subr.mxu0 0.0
  %138 = vmatpush1.msra.mxu0 %v52
  %139 = vmatprep.subr.mxu0 0.0
  %140 = vmatpush1.msra.mxu0 %v51
  %141 = vmatprep.subr.mxu0 0.0
  %142 = vmatpush1.msra.mxu0 %v50
  %143 = vmatprep.subr.mxu0 0.0
  %144 = vmatpush1.msra.mxu0 %v49
  %145 = vmatprep.subr.mxu0 0.0
  %146 = vmatpush1.msra.mxu0 %v48
  %147 = vmatprep.subr.mxu0 0.0
  %148 = vmatpush2.msra.mxu0 0.0
  %149 = vmatprep.subr.mxu0 0.0
  %150 = vmatpush2.msra.mxu0 0.0
  %151 = vmatprep.subr.mxu0 0.0
  %152 = vmatpush2.msra.mxu0 0.0
  %153 = vmatprep.subr.mxu0 0.0
  %154 = vmatpush2.msra.mxu0 0.0
  %155 = vmatprep.subr.mxu0 0.0
  %156 = vmatpush2.msra.mxu0 0.0
  %157 = vmatprep.subr.mxu0 0.0
  %158 = vmatpush2.msra.mxu0 0.0
  %159 = vmatprep.subr.mxu0 0.0
  %160 = vmatpush2.msra.mxu0 0.0
  %161 = vmatprep.subr.mxu0 0.0
  %162 = vmatpush2.msra.mxu0 0.0
  %163 = vmatprep.subr.mxu0 0.0
  %164 = vmatpush2.msra.mxu0 0.0
  %165 = vmatprep.subr.mxu0 0.0
  %166 = vmatpush2.msra.mxu0 0.0
  %167 = vmatprep.subr.mxu0 0.0
  %168 = vmatpush2.msra.mxu0 0.0
  %169 = vmatprep.subr.mxu0 0.0
  %170 = vmatpush2.msra.mxu0 0.0
  %171 = vmatprep.subr.mxu0 0.0
  %172 = vmatpush2.msra.mxu0 0.0
  %173 = vmatprep.subr.mxu0 0.0
  %174 = vmatpush2.msra.mxu0 0.0
  %175 = vmatprep.subr.mxu0 0.0
  %176 = vmatpush2.msra.mxu0 0.0
  %177 = vmatprep.subr.mxu0 0.0
  %178 = vmatpush2.msra.mxu0 0.0
  %179 = vmatprep.mubr.f32.mxu0 0.0
  %180 = vmatmul.mubr.f32.gmra.mxu0 %v64
  %v181 = vpop.f32.mrf.mxu0
  %v182 = vadd.f32 %v60, %v181
  %v183 = vpop.f32.mrf.mxu0
  %184 = vmatprep.mubr.f32.mxu0 0.0
  %185 = vmatmul.mubr.f32.gmra.mxu0 %v67
  %v186 = vpop.f32.mrf.mxu0
  %v187 = vadd.f32 %v60, %v186
  %v188 = vpop.f32.mrf.mxu0
  %189 = vmatprep.mubr.f32.mxu0 0.0
  %190 = vmatmul.mubr.f32.gmra.mxu0 %v70
  %v191 = vpop.f32.mrf.mxu0
  %v192 = vadd.f32 %v60, %v191
  %v193 = vpop.f32.mrf.mxu0
  %194 = vmatprep.mubr.f32.mxu0 0.0
  %195 = vmatmul.mubr.f32.gmra.mxu0 %v73
  %v196 = vpop.f32.mrf.mxu0
  %v197 = vadd.f32 %v60, %v196
  %v198 = vpop.f32.mrf.mxu0
  %199 = vmatprep.mubr.f32.mxu0 0.0
  %200 = vmatmul.mubr.f32.gmra.mxu0 %v76
  %v201 = vpop.f32.mrf.mxu0
  %v202 = vadd.f32 %v60, %v201
  %v203 = vpop.f32.mrf.mxu0
  %204 = vmatprep.mubr.f32.mxu0 0.0
  %205 = vmatmul.mubr.f32.gmra.mxu0 %v79
  %v206 = vpop.f32.mrf.mxu0
  %v207 = vadd.f32 %v60, %v206
  %v208 = vpop.f32.mrf.mxu0
  %209 = vmatprep.mubr.f32.mxu0 0.0
  %210 = vmatmul.mubr.f32.gmra.mxu0 %v82
  %v211 = vpop.f32.mrf.mxu0
  %v212 = vadd.f32 %v60, %v211
  %v213 = vpop.f32.mrf.mxu0
  %214 = vmatprep.mubr.f32.mxu0 0.0
  %215 = vmatmul.mubr.f32.gmra.mxu0 %v85
  %v216 = vpop.f32.mrf.mxu0
  %v217 = vadd.f32 %v60, %v216
  %v218 = vpop.f32.mrf.mxu0
  %219 = vmatprep.mubr.f32.mxu0 0.0
  %220 = vmatmul.mubr.f32.gmra.mxu0 %v88
  %v221 = vpop.f32.mrf.mxu0
  %v222 = vadd.f32 %v60, %v221
  %v223 = vpop.f32.mrf.mxu0
  %224 = vmatprep.mubr.f32.mxu0 0.0
  %225 = vmatmul.mubr.f32.gmra.mxu0 %v91
  %v226 = vpop.f32.mrf.mxu0
  %v227 = vadd.f32 %v60, %v226
  %v228 = vpop.f32.mrf.mxu0
  %229 = vmatprep.mubr.f32.mxu0 0.0
  %230 = vmatmul.mubr.f32.gmra.mxu0 %v94
  %v231 = vpop.f32.mrf.mxu0
  %v232 = vadd.f32 %v60, %v231
  %v233 = vpop.f32.mrf.mxu0
  %234 = vmatprep.mubr.f32.mxu0 0.0
  %235 = vmatmul.mubr.f32.gmra.mxu0 %v97
  %v236 = vpop.f32.mrf.mxu0
  %v237 = vadd.f32 %v60, %v236
  %v238 = vpop.f32.mrf.mxu0
  %239 = vmatprep.mubr.f32.mxu0 0.0
  %240 = vmatmul.mubr.f32.gmra.mxu0 %v100
  %v241 = vpop.f32.mrf.mxu0
  %v242 = vadd.f32 %v60, %v241
  %v243 = vpop.f32.mrf.mxu0
  %244 = vmatprep.mubr.f32.mxu0 0.0
  %245 = vmatmul.mubr.f32.gmra.mxu0 %v103
  %v246 = vpop.f32.mrf.mxu0
  %v247 = vadd.f32 %v60, %v246
  %v248 = vpop.f32.mrf.mxu0
  %249 = vmatprep.mubr.f32.mxu0 0.0
  %250 = vmatmul.mubr.f32.gmra.mxu0 %v106
  %v251 = vpop.f32.mrf.mxu0
  %v252 = vadd.f32 %v60, %v251
  %v253 = vpop.f32.mrf.mxu0
  %254 = vmatprep.mubr.f32.mxu0 0.0
  %255 = vmatmul.mubr.f32.gmra.mxu0 %v109
  %v256 = vpop.f32.mrf.mxu0
  %v257 = vadd.f32 %v60, %v256
  %v258 = vpop.f32.mrf.mxu0
  %259 = vdwg.mxu0
  %v260 = vmax.f32 %v182, 0.0
  %v261 = vmax.f32 %v187, 0.0
  %v262 = vmax.f32 %v192, 0.0
  %v263 = vmax.f32 %v197, 0.0
  %v264 = vmax.f32 %v202, 0.0
  %v265 = vmax.f32 %v207, 0.0
  %v266 = vmax.f32 %v212, 0.0
  %v267 = vmax.f32 %v217, 0.0
  %v268 = vmax.f32 %v222, 0.0
  %v269 = vmax.f32 %v227, 0.0
  %v270 = vmax.f32 %v232, 0.0
  %v271 = vmax.f32 %v237, 0.0
  %v272 = vmax.f32 %v242, 0.0
  %v273 = vmax.f32 %v247, 0.0
  %v274 = vmax.f32 %v252, 0.0
  %v275 = vmax.f32 %v257, 0.0
  %v276 = vld [vmem:[%s3] sm:$0xff]
  %v277 = vld [vmem:[%s3 + $0x8] sm:$0x3]
  %v278 = vld [vmem:[%s4] sm:$0x1]
  %v280 = vlaneseq
  %v281 = vshrl.u32 %v280, 7
  %v282 = vsub.s32 0, %v281
  %v283 = vrot.slane %v278, %v282
  %vm285 = vcmask 80896
  %v287 = vsel %vm285, %v260, 0
  %v290 = vsel %vm285, %v261, 0
  %v293 = vsel %vm285, %v262, 0
  %v296 = vsel %vm285, %v263, 0
  %v299 = vsel %vm285, %v264, 0
  %v302 = vsel %vm285, %v265, 0
  %v305 = vsel %vm285, %v266, 0
  %v308 = vsel %vm285, %v267, 0
  %v311 = vsel %vm285, %v268, 0
  %v314 = vsel %vm285, %v269, 0
  %v317 = vsel %vm285, %v270, 0
  %v320 = vsel %vm285, %v271, 0
  %v323 = vsel %vm285, %v272, 0
  %v326 = vsel %vm285, %v273, 0
  %v329 = vsel %vm285, %v274, 0
  %v332 = vsel %vm285, %v275, 0
  %v335 = vsel %vm111, %v277, 0
  %337 = vmatprep.subr.mxu0 0.0
  %338 = vmatpush1.msra.mxu0 0.0
  %339 = vmatprep.subr.mxu0 0.0
  %340 = vmatpush1.msra.mxu0 0.0
  %341 = vmatprep.subr.mxu0 0.0
  %342 = vmatpush1.msra.mxu0 0.0
  %343 = vmatprep.subr.mxu0 0.0
  %344 = vmatpush1.msra.mxu0 0.0
  %345 = vmatprep.subr.mxu0 0.0
  %346 = vmatpush1.msra.mxu0 0.0
  %347 = vmatprep.subr.mxu0 0.0
  %348 = vmatpush1.msra.mxu0 0.0
  %349 = vmatprep.subr.mxu0 0.0
  %350 = vmatpush1.msra.mxu0 0.0
  %351 = vmatprep.subr.mxu0 0.0
  %352 = vmatpush1.msra.mxu0 0.0
  %353 = vmatprep.subr.mxu0 0.0
  %354 = vmatpush1.msra.mxu0 0.0
  %355 = vmatprep.subr.mxu0 0.0
  %356 = vmatpush1.msra.mxu0 0.0
  %357 = vmatprep.subr.mxu0 0.0
  %358 = vmatpush1.msra.mxu0 0.0
  %359 = vmatprep.subr.mxu0 0.0
  %360 = vmatpush1.msra.mxu0 0.0
  %361 = vmatprep.subr.mxu0 0.0
  %362 = vmatpush1.msra.mxu0 0.0
  %363 = vmatprep.subr.mxu0 0.0
  %364 = vmatpush1.msra.mxu0 0.0
  %365 = vmatprep.subr.mxu0 0.0
  %366 = vmatpush1.msra.mxu0 %v335
  %367 = vmatprep.subr.mxu0 0.0
  %368 = vmatpush1.msra.mxu0 %v276
  %369 = vmatprep.subr.mxu0 0.0
  %370 = vmatpush2.msra.mxu0 0.0
  %371 = vmatprep.subr.mxu0 0.0
  %372 = vmatpush2.msra.mxu0 0.0
  %373 = vmatprep.subr.mxu0 0.0
  %374 = vmatpush2.msra.mxu0 0.0
  %375 = vmatprep.subr.mxu0 0.0
  %376 = vmatpush2.msra.mxu0 0.0
  %377 = vmatprep.subr.mxu0 0.0
  %378 = vmatpush2.msra.mxu0 0.0
  %379 = vmatprep.subr.mxu0 0.0
  %380 = vmatpush2.msra.mxu0 0.0
  %381 = vmatprep.subr.mxu0 0.0
  %382 = vmatpush2.msra.mxu0 0.0
  %383 = vmatprep.subr.mxu0 0.0
  %384 = vmatpush2.msra.mxu0 0.0
  %385 = vmatprep.subr.mxu0 0.0
  %386 = vmatpush2.msra.mxu0 0.0
  %387 = vmatprep.subr.mxu0 0.0
  %388 = vmatpush2.msra.mxu0 0.0
  %389 = vmatprep.subr.mxu0 0.0
  %390 = vmatpush2.msra.mxu0 0.0
  %391 = vmatprep.subr.mxu0 0.0
  %392 = vmatpush2.msra.mxu0 0.0
  %393 = vmatprep.subr.mxu0 0.0
  %394 = vmatpush2.msra.mxu0 0.0
  %395 = vmatprep.subr.mxu0 0.0
  %396 = vmatpush2.msra.mxu0 0.0
  %397 = vmatprep.subr.mxu0 0.0
  %398 = vmatpush2.msra.mxu0 0.0
  %399 = vmatprep.subr.mxu0 0.0
  %400 = vmatpush2.msra.mxu0 0.0
  %401 = vmatprep.mubr.f32.mxu0 0.0
  %402 = vmatmul.mubr.f32.gmra.mxu0 %v287
  %v403 = vpop.f32.mrf.mxu0
  %v404 = vadd.f32 %v283, %v403
  %v405 = vpop.f32.mrf.mxu0
  %406 = vmatprep.mubr.f32.mxu0 0.0
  %407 = vmatmul.mubr.f32.gmra.mxu0 %v290
  %v408 = vpop.f32.mrf.mxu0
  %v409 = vadd.f32 %v283, %v408
  %v410 = vpop.f32.mrf.mxu0
  %411 = vmatprep.mubr.f32.mxu0 0.0
  %412 = vmatmul.mubr.f32.gmra.mxu0 %v293
  %v413 = vpop.f32.mrf.mxu0
  %v414 = vadd.f32 %v283, %v413
  %v415 = vpop.f32.mrf.mxu0
  %416 = vmatprep.mubr.f32.mxu0 0.0
  %417 = vmatmul.mubr.f32.gmra.mxu0 %v296
  %v418 = vpop.f32.mrf.mxu0
  %v419 = vadd.f32 %v283, %v418
  %v420 = vpop.f32.mrf.mxu0
  %421 = vmatprep.mubr.f32.mxu0 0.0
  %422 = vmatmul.mubr.f32.gmra.mxu0 %v299
  %v423 = vpop.f32.mrf.mxu0
  %v424 = vadd.f32 %v283, %v423
  %v425 = vpop.f32.mrf.mxu0
  %426 = vmatprep.mubr.f32.mxu0 0.0
  %427 = vmatmul.mubr.f32.gmra.mxu0 %v302
  %v428 = vpop.f32.mrf.mxu0
  %v429 = vadd.f32 %v283, %v428
  %v430 = vpop.f32.mrf.mxu0
  %431 = vmatprep.mubr.f32.mxu0 0.0
  %432 = vmatmul.mubr.f32.gmra.mxu0 %v305
  %v433 = vpop.f32.mrf.mxu0
  %v434 = vadd.f32 %v283, %v433
  %v435 = vpop.f32.mrf.mxu0
  %436 = vmatprep.mubr.f32.mxu0 0.0
  %437 = vmatmul.mubr.f32.gmra.mxu0 %v308
  %v438 = vpop.f32.mrf.mxu0
  %v439 = vadd.f32 %v283, %v438
  %v440 = vpop.f32.mrf.mxu0
  %441 = vmatprep.mubr.f32.mxu0 0.0
  %442 = vmatmul.mubr.f32.gmra.mxu0 %v311
  %v443 = vpop.f32.mrf.mxu0
  %v444 = vadd.f32 %v283, %v443
  %v445 = vpop.f32.mrf.mxu0
  %446 = vmatprep.mubr.f32.mxu0 0.0
  %447 = vmatmul.mubr.f32.gmra.mxu0 %v314
  %v448 = vpop.f32.mrf.mxu0
  %v449 = vadd.f32 %v283, %v448
  %v450 = vpop.f32.mrf.mxu0
  %451 = vmatprep.mubr.f32.mxu0 0.0
  %452 = vmatmul.mubr.f32.gmra.mxu0 %v317
  %v453 = vpop.f32.mrf.mxu0
  %v454 = vadd.f32 %v283, %v453
  %v455 = vpop.f32.mrf.mxu0
  %456 = vmatprep.mubr.f32.mxu0 0.0
  %457 = vmatmul.mubr.f32.gmra.mxu0 %v320
  %v458 = vpop.f32.mrf.mxu0
  %v459 = vadd.f32 %v283, %v458
  %v460 = vpop.f32.mrf.mxu0
  %461 = vmatprep.mubr.f32.mxu0 0.0
  %462 = vmatmul.mubr.f32.gmra.mxu0 %v323
  %v463 = vpop.f32.mrf.mxu0
  %v464 = vadd.f32 %v283, %v463
  %v465 = vpop.f32.mrf.mxu0
  %466 = vmatprep.mubr.f32.mxu0 0.0
  %467 = vmatmul.mubr.f32.gmra.mxu0 %v326
  %v468 = vpop.f32.mrf.mxu0
  %v469 = vadd.f32 %v283, %v468
  %v470 = vpop.f32.mrf.mxu0
  %471 = vmatprep.mubr.f32.mxu0 0.0
  %472 = vmatmul.mubr.f32.gmra.mxu0 %v329
  %v473 = vpop.f32.mrf.mxu0
  %v474 = vadd.f32 %v283, %v473
  %v475 = vpop.f32.mrf.mxu0
  %476 = vmatprep.mubr.f32.mxu0 0.0
  %477 = vmatmul.mubr.f32.gmra.mxu0 %v332
  %v478 = vpop.f32.mrf.mxu0
  %v479 = vadd.f32 %v283, %v478
  %v480 = vpop.f32.mrf.mxu0
  %481 = vdwg.mxu0
  %v482 = vmax.f32 %v404, 0.0
  %v483 = vmax.f32 %v409, 0.0
  %v484 = vmax.f32 %v414, 0.0
  %v485 = vmax.f32 %v419, 0.0
  %v486 = vmax.f32 %v424, 0.0
  %v487 = vmax.f32 %v429, 0.0
  %v488 = vmax.f32 %v434, 0.0
  %v489 = vmax.f32 %v439, 0.0
  %v490 = vmax.f32 %v444, 0.0
  %v491 = vmax.f32 %v449, 0.0
  %v492 = vmax.f32 %v454, 0.0
  %v493 = vmax.f32 %v459, 0.0
  %v494 = vmax.f32 %v464, 0.0
  %v495 = vmax.f32 %v469, 0.0
  %v496 = vmax.f32 %v474, 0.0
  %v497 = vmax.f32 %v479, 0.0
  %v498 = vld [vmem:[%s5] sm:$0xff]
  %v499 = vld [vmem:[%s5 + $0x8] sm:$0xff]
  %v500 = vld [vmem:[%s5 + $0x10] sm:$0xf]
  %v501 = vld [vmem:[%s6] sm:$0x1]
  %v503 = vlaneseq
  %v504 = vshrl.u32 %v503, 7
  %v505 = vsub.s32 0, %v504
  %v506 = vrot.slane %v501, %v505
  %vm508 = vcmask 162816
  %v510 = vsel %vm508, %v482, 0
  %v513 = vsel %vm508, %v483, 0
  %v516 = vsel %vm508, %v484, 0
  %v519 = vsel %vm508, %v485, 0
  %v522 = vsel %vm508, %v486, 0
  %v525 = vsel %vm508, %v487, 0
  %v528 = vsel %vm508, %v488, 0
  %v531 = vsel %vm508, %v489, 0
  %v534 = vsel %vm508, %v490, 0
  %v537 = vsel %vm508, %v491, 0
  %v540 = vsel %vm508, %v492, 0
  %v543 = vsel %vm508, %v493, 0
  %v546 = vsel %vm508, %v494, 0
  %v549 = vsel %vm508, %v495, 0
  %v552 = vsel %vm508, %v496, 0
  %v555 = vsel %vm508, %v497, 0
  %vm557 = vcmask 1043456
  %v559 = vsel %vm557, %v500, 0
  %561 = vmatprep.subr.mxu0 0.0
  %562 = vmatpush1.msra.mxu0 0.0
  %563 = vmatprep.subr.mxu0 0.0
  %564 = vmatpush1.msra.mxu0 0.0
  %565 = vmatprep.subr.mxu0 0.0
  %566 = vmatpush1.msra.mxu0 0.0
  %567 = vmatprep.subr.mxu0 0.0
  %568 = vmatpush1.msra.mxu0 0.0
  %569 = vmatprep.subr.mxu0 0.0
  %570 = vmatpush1.msra.mxu0 0.0
  %571 = vmatprep.subr.mxu0 0.0
  %572 = vmatpush1.msra.mxu0 0.0
  %573 = vmatprep.subr.mxu0 0.0
  %574 = vmatpush1.msra.mxu0 0.0
  %575 = vmatprep.subr.mxu0 0.0
  %576 = vmatpush1.msra.mxu0 0.0
  %577 = vmatprep.subr.mxu0 0.0
  %578 = vmatpush1.msra.mxu0 0.0
  %579 = vmatprep.subr.mxu0 0.0
  %580 = vmatpush1.msra.mxu0 0.0
  %581 = vmatprep.subr.mxu0 0.0
  %582 = vmatpush1.msra.mxu0 0.0
  %583 = vmatprep.subr.mxu0 0.0
  %584 = vmatpush1.msra.mxu0 0.0
  %585 = vmatprep.subr.mxu0 0.0
  %586 = vmatpush1.msra.mxu0 0.0
  %587 = vmatprep.subr.mxu0 0.0
  %588 = vmatpush1.msra.mxu0 %v559
  %589 = vmatprep.subr.mxu0 0.0
  %590 = vmatpush1.msra.mxu0 %v499
  %591 = vmatprep.subr.mxu0 0.0
  %592 = vmatpush1.msra.mxu0 %v498
  %593 = vmatprep.subr.mxu0 0.0
  %594 = vmatpush2.msra.mxu0 0.0
  %595 = vmatprep.subr.mxu0 0.0
  %596 = vmatpush2.msra.mxu0 0.0
  %597 = vmatprep.subr.mxu0 0.0
  %598 = vmatpush2.msra.mxu0 0.0
  %599 = vmatprep.subr.mxu0 0.0
  %600 = vmatpush2.msra.mxu0 0.0
  %601 = vmatprep.subr.mxu0 0.0
  %602 = vmatpush2.msra.mxu0 0.0
  %603 = vmatprep.subr.mxu0 0.0
  %604 = vmatpush2.msra.mxu0 0.0
  %605 = vmatprep.subr.mxu0 0.0
  %606 = vmatpush2.msra.mxu0 0.0
  %607 = vmatprep.subr.mxu0 0.0
  %608 = vmatpush2.msra.mxu0 0.0
  %609 = vmatprep.subr.mxu0 0.0
  %610 = vmatpush2.msra.mxu0 0.0
  %611 = vmatprep.subr.mxu0 0.0
  %612 = vmatpush2.msra.mxu0 0.0
  %613 = vmatprep.subr.mxu0 0.0
  %614 = vmatpush2.msra.mxu0 0.0
  %615 = vmatprep.subr.mxu0 0.0
  %616 = vmatpush2.msra.mxu0 0.0
  %617 = vmatprep.subr.mxu0 0.0
  %618 = vmatpush2.msra.mxu0 0.0
  %619 = vmatprep.subr.mxu0 0.0
  %620 = vmatpush2.msra.mxu0 0.0
  %621 = vmatprep.subr.mxu0 0.0
  %622 = vmatpush2.msra.mxu0 0.0
  %623 = vmatprep.subr.mxu0 0.0
  %624 = vmatpush2.msra.mxu0 0.0
  %625 = vmatprep.mubr.f32.mxu0 0.0
  %626 = vmatmul.mubr.f32.gmra.mxu0 %v510
  %v627 = vpop.f32.mrf.mxu0
  %v628 = vadd.f32 %v506, %v627
  %v629 = vpop.f32.mrf.mxu0
  %630 = vmatprep.mubr.f32.mxu0 0.0
  %631 = vmatmul.mubr.f32.gmra.mxu0 %v513
  %v632 = vpop.f32.mrf.mxu0
  %v633 = vadd.f32 %v506, %v632
  %v634 = vpop.f32.mrf.mxu0
  %635 = vmatprep.mubr.f32.mxu0 0.0
  %636 = vmatmul.mubr.f32.gmra.mxu0 %v516
  %v637 = vpop.f32.mrf.mxu0
  %v638 = vadd.f32 %v506, %v637
  %v639 = vpop.f32.mrf.mxu0
  %640 = vmatprep.mubr.f32.mxu0 0.0
  %641 = vmatmul.mubr.f32.gmra.mxu0 %v519
  %v642 = vpop.f32.mrf.mxu0
  %v643 = vadd.f32 %v506, %v642
  %v644 = vpop.f32.mrf.mxu0
  %645 = vmatprep.mubr.f32.mxu0 0.0
  %646 = vmatmul.mubr.f32.gmra.mxu0 %v522
  %v647 = vpop.f32.mrf.mxu0
  %v648 = vadd.f32 %v506, %v647
  %v649 = vpop.f32.mrf.mxu0
  %650 = vmatprep.mubr.f32.mxu0 0.0
  %651 = vmatmul.mubr.f32.gmra.mxu0 %v525
  %v652 = vpop.f32.mrf.mxu0
  %v653 = vadd.f32 %v506, %v652
  %v654 = vpop.f32.mrf.mxu0
  %655 = vmatprep.mubr.f32.mxu0 0.0
  %656 = vmatmul.mubr.f32.gmra.mxu0 %v528
  %v657 = vpop.f32.mrf.mxu0
  %v658 = vadd.f32 %v506, %v657
  %v659 = vpop.f32.mrf.mxu0
  %660 = vmatprep.mubr.f32.mxu0 0.0
  %661 = vmatmul.mubr.f32.gmra.mxu0 %v531
  %v662 = vpop.f32.mrf.mxu0
  %v663 = vadd.f32 %v506, %v662
  %v664 = vpop.f32.mrf.mxu0
  %665 = vmatprep.mubr.f32.mxu0 0.0
  %666 = vmatmul.mubr.f32.gmra.mxu0 %v534
  %v667 = vpop.f32.mrf.mxu0
  %v668 = vadd.f32 %v506, %v667
  %v669 = vpop.f32.mrf.mxu0
  %670 = vmatprep.mubr.f32.mxu0 0.0
  %671 = vmatmul.mubr.f32.gmra.mxu0 %v537
  %v672 = vpop.f32.mrf.mxu0
  %v673 = vadd.f32 %v506, %v672
  %v674 = vpop.f32.mrf.mxu0
  %675 = vmatprep.mubr.f32.mxu0 0.0
  %676 = vmatmul.mubr.f32.gmra.mxu0 %v540
  %v677 = vpop.f32.mrf.mxu0
  %v678 = vadd.f32 %v506, %v677
  %v679 = vpop.f32.mrf.mxu0
  %680 = vmatprep.mubr.f32.mxu0 0.0
  %681 = vmatmul.mubr.f32.gmra.mxu0 %v543
  %v682 = vpop.f32.mrf.mxu0
  %v683 = vadd.f32 %v506, %v682
  %v684 = vpop.f32.mrf.mxu0
  %685 = vmatprep.mubr.f32.mxu0 0.0
  %686 = vmatmul.mubr.f32.gmra.mxu0 %v546
  %v687 = vpop.f32.mrf.mxu0
  %v688 = vadd.f32 %v506, %v687
  %v689 = vpop.f32.mrf.mxu0
  %690 = vmatprep.mubr.f32.mxu0 0.0
  %691 = vmatmul.mubr.f32.gmra.mxu0 %v549
  %v692 = vpop.f32.mrf.mxu0
  %v693 = vadd.f32 %v506, %v692
  %v694 = vpop.f32.mrf.mxu0
  %695 = vmatprep.mubr.f32.mxu0 0.0
  %696 = vmatmul.mubr.f32.gmra.mxu0 %v552
  %v697 = vpop.f32.mrf.mxu0
  %v698 = vadd.f32 %v506, %v697
  %v699 = vpop.f32.mrf.mxu0
  %700 = vmatprep.mubr.f32.mxu0 0.0
  %701 = vmatmul.mubr.f32.gmra.mxu0 %v555
  %v702 = vpop.f32.mrf.mxu0
  %v703 = vadd.f32 %v506, %v702
  %v704 = vpop.f32.mrf.mxu0
  %705 = vdwg.mxu0
  %v706 = vmax.f32 %v628, 0.0
  %v707 = vmax.f32 %v633, 0.0
  %v708 = vmax.f32 %v638, 0.0
  %v709 = vmax.f32 %v643, 0.0
  %v710 = vmax.f32 %v648, 0.0
  %v711 = vmax.f32 %v653, 0.0
  %v712 = vmax.f32 %v658, 0.0
  %v713 = vmax.f32 %v663, 0.0
  %v714 = vmax.f32 %v668, 0.0
  %v715 = vmax.f32 %v673, 0.0
  %v716 = vmax.f32 %v678, 0.0
  %v717 = vmax.f32 %v683, 0.0
  %v718 = vmax.f32 %v688, 0.0
  %v719 = vmax.f32 %v693, 0.0
  %v720 = vmax.f32 %v698, 0.0
  %v721 = vmax.f32 %v703, 0.0
  %v722 = vld [vmem:[%s7] sm:$0xff]
  %v723 = vld [vmem:[%s7 + $0x8] sm:$0x3]
  %v724 = vld [vmem:[%s8] sm:$0x1]
  %v726 = vlaneseq
  %v727 = vshrl.u32 %v726, 7
  %v728 = vsub.s32 0, %v727
  %v729 = vrot.slane %v724, %v728
  %v732 = vsel %vm285, %v706, 0
  %v735 = vsel %vm285, %v707, 0
  %v738 = vsel %vm285, %v708, 0
  %v741 = vsel %vm285, %v709, 0
  %v744 = vsel %vm285, %v710, 0
  %v747 = vsel %vm285, %v711, 0
  %v750 = vsel %vm285, %v712, 0
  %v753 = vsel %vm285, %v713, 0
  %v756 = vsel %vm285, %v714, 0
  %v759 = vsel %vm285, %v715, 0
  %v762 = vsel %vm285, %v716, 0
  %v765 = vsel %vm285, %v717, 0
  %v768 = vsel %vm285, %v718, 0
  %v771 = vsel %vm285, %v719, 0
  %v774 = vsel %vm285, %v720, 0
  %v777 = vsel %vm285, %v721, 0
  %v780 = vsel %vm111, %v723, 0
  %782 = vmatprep.subr.mxu0 0.0
  %783 = vmatpush1.msra.mxu0 0.0
  %784 = vmatprep.subr.mxu0 0.0
  %785 = vmatpush1.msra.mxu0 0.0
  %786 = vmatprep.subr.mxu0 0.0
  %787 = vmatpush1.msra.mxu0 0.0
  %788 = vmatprep.subr.mxu0 0.0
  %789 = vmatpush1.msra.mxu0 0.0
  %790 = vmatprep.subr.mxu0 0.0
  %791 = vmatpush1.msra.mxu0 0.0
  %792 = vmatprep.subr.mxu0 0.0
  %793 = vmatpush1.msra.mxu0 0.0
  %794 = vmatprep.subr.mxu0 0.0
  %795 = vmatpush1.msra.mxu0 0.0
  %796 = vmatprep.subr.mxu0 0.0
  %797 = vmatpush1.msra.mxu0 0.0
  %798 = vmatprep.subr.mxu0 0.0
  %799 = vmatpush1.msra.mxu0 0.0
  %800 = vmatprep.subr.mxu0 0.0
  %801 = vmatpush1.msra.mxu0 0.0
  %802 = vmatprep.subr.mxu0 0.0
  %803 = vmatpush1.msra.mxu0 0.0
  %804 = vmatprep.subr.mxu0 0.0
  %805 = vmatpush1.msra.mxu0 0.0
  %806 = vmatprep.subr.mxu0 0.0
  %807 = vmatpush1.msra.mxu0 0.0
  %808 = vmatprep.subr.mxu0 0.0
  %809 = vmatpush1.msra.mxu0 0.0
  %810 = vmatprep.subr.mxu0 0.0
  %811 = vmatpush1.msra.mxu0 %v780
  %812 = vmatprep.subr.mxu0 0.0
  %813 = vmatpush1.msra.mxu0 %v722
  %814 = vmatprep.subr.mxu0 0.0
  %815 = vmatpush2.msra.mxu0 0.0
  %816 = vmatprep.subr.mxu0 0.0
  %817 = vmatpush2.msra.mxu0 0.0
  %818 = vmatprep.subr.mxu0 0.0
  %819 = vmatpush2.msra.mxu0 0.0
  %820 = vmatprep.subr.mxu0 0.0
  %821 = vmatpush2.msra.mxu0 0.0
  %822 = vmatprep.subr.mxu0 0.0
  %823 = vmatpush2.msra.mxu0 0.0
  %824 = vmatprep.subr.mxu0 0.0
  %825 = vmatpush2.msra.mxu0 0.0
  %826 = vmatprep.subr.mxu0 0.0
  %827 = vmatpush2.msra.mxu0 0.0
  %828 = vmatprep.subr.mxu0 0.0
  %829 = vmatpush2.msra.mxu0 0.0
  %830 = vmatprep.subr.mxu0 0.0
  %831 = vmatpush2.msra.mxu0 0.0
  %832 = vmatprep.subr.mxu0 0.0
  %833 = vmatpush2.msra.mxu0 0.0
  %834 = vmatprep.subr.mxu0 0.0
  %835 = vmatpush2.msra.mxu0 0.0
  %836 = vmatprep.subr.mxu0 0.0
  %837 = vmatpush2.msra.mxu0 0.0
  %838 = vmatprep.subr.mxu0 0.0
  %839 = vmatpush2.msra.mxu0 0.0
  %840 = vmatprep.subr.mxu0 0.0
  %841 = vmatpush2.msra.mxu0 0.0
  %842 = vmatprep.subr.mxu0 0.0
  %843 = vmatpush2.msra.mxu0 0.0
  %844 = vmatprep.subr.mxu0 0.0
  %845 = vmatpush2.msra.mxu0 0.0
  %846 = vmatprep.mubr.f32.mxu0 0.0
  %847 = vmatmul.mubr.f32.gmra.mxu0 %v732
  %v848 = vpop.f32.mrf.mxu0
  %v849 = vadd.f32 %v729, %v848
  %v850 = vpop.f32.mrf.mxu0
  %851 = vmatprep.mubr.f32.mxu0 0.0
  %852 = vmatmul.mubr.f32.gmra.mxu0 %v735
  %v853 = vpop.f32.mrf.mxu0
  %v854 = vadd.f32 %v729, %v853
  %v855 = vpop.f32.mrf.mxu0
  %856 = vmatprep.mubr.f32.mxu0 0.0
  %857 = vmatmul.mubr.f32.gmra.mxu0 %v738
  %v858 = vpop.f32.mrf.mxu0
  %v859 = vadd.f32 %v729, %v858
  %v860 = vpop.f32.mrf.mxu0
  %861 = vmatprep.mubr.f32.mxu0 0.0
  %862 = vmatmul.mubr.f32.gmra.mxu0 %v741
  %v863 = vpop.f32.mrf.mxu0
  %v864 = vadd.f32 %v729, %v863
  %v865 = vpop.f32.mrf.mxu0
  %866 = vmatprep.mubr.f32.mxu0 0.0
  %867 = vmatmul.mubr.f32.gmra.mxu0 %v744
  %v868 = vpop.f32.mrf.mxu0
  %v869 = vadd.f32 %v729, %v868
  %v870 = vpop.f32.mrf.mxu0
  %871 = vmatprep.mubr.f32.mxu0 0.0
  %872 = vmatmul.mubr.f32.gmra.mxu0 %v747
  %v873 = vpop.f32.mrf.mxu0
  %v874 = vadd.f32 %v729, %v873
  %v875 = vpop.f32.mrf.mxu0
  %876 = vmatprep.mubr.f32.mxu0 0.0
  %877 = vmatmul.mubr.f32.gmra.mxu0 %v750
  %v878 = vpop.f32.mrf.mxu0
  %v879 = vadd.f32 %v729, %v878
  %v880 = vpop.f32.mrf.mxu0
  %881 = vmatprep.mubr.f32.mxu0 0.0
  %882 = vmatmul.mubr.f32.gmra.mxu0 %v753
  %v883 = vpop.f32.mrf.mxu0
  %v884 = vadd.f32 %v729, %v883
  %v885 = vpop.f32.mrf.mxu0
  %886 = vmatprep.mubr.f32.mxu0 0.0
  %887 = vmatmul.mubr.f32.gmra.mxu0 %v756
  %v888 = vpop.f32.mrf.mxu0
  %v889 = vadd.f32 %v729, %v888
  %v890 = vpop.f32.mrf.mxu0
  %891 = vmatprep.mubr.f32.mxu0 0.0
  %892 = vmatmul.mubr.f32.gmra.mxu0 %v759
  %v893 = vpop.f32.mrf.mxu0
  %v894 = vadd.f32 %v729, %v893
  %v895 = vpop.f32.mrf.mxu0
  %896 = vmatprep.mubr.f32.mxu0 0.0
  %897 = vmatmul.mubr.f32.gmra.mxu0 %v762
  %v898 = vpop.f32.mrf.mxu0
  %v899 = vadd.f32 %v729, %v898
  %v900 = vpop.f32.mrf.mxu0
  %901 = vmatprep.mubr.f32.mxu0 0.0
  %902 = vmatmul.mubr.f32.gmra.mxu0 %v765
  %v903 = vpop.f32.mrf.mxu0
  %v904 = vadd.f32 %v729, %v903
  %v905 = vpop.f32.mrf.mxu0
  %906 = vmatprep.mubr.f32.mxu0 0.0
  %907 = vmatmul.mubr.f32.gmra.mxu0 %v768
  %v908 = vpop.f32.mrf.mxu0
  %v909 = vadd.f32 %v729, %v908
  %v910 = vpop.f32.mrf.mxu0
  %911 = vmatprep.mubr.f32.mxu0 0.0
  %912 = vmatmul.mubr.f32.gmra.mxu0 %v771
  %v913 = vpop.f32.mrf.mxu0
  %v914 = vadd.f32 %v729, %v913
  %v915 = vpop.f32.mrf.mxu0
  %916 = vmatprep.mubr.f32.mxu0 0.0
  %917 = vmatmul.mubr.f32.gmra.mxu0 %v774
  %v918 = vpop.f32.mrf.mxu0
  %v919 = vadd.f32 %v729, %v918
  %v920 = vpop.f32.mrf.mxu0
  %921 = vmatprep.mubr.f32.mxu0 0.0
  %922 = vmatmul.mubr.f32.gmra.mxu0 %v777
  %v923 = vpop.f32.mrf.mxu0
  %v924 = vadd.f32 %v729, %v923
  %v925 = vpop.f32.mrf.mxu0
  %926 = vdwg.mxu0
  %vm927 = vcmask 15360
  %928 = vst.msk [vmem:[%s9] sm:$0xff] %vm927, %v849
  %929 = vst.msk [vmem:[%s9 + $0x8] sm:$0xff] %vm927, %v854
  %930 = vst.msk [vmem:[%s9 + $0x10] sm:$0xff] %vm927, %v859
  %931 = vst.msk [vmem:[%s9 + $0x18] sm:$0xff] %vm927, %v864
  %932 = vst.msk [vmem:[%s9 + $0x20] sm:$0xff] %vm927, %v869
  %933 = vst.msk [vmem:[%s9 + $0x28] sm:$0xff] %vm927, %v874
  %934 = vst.msk [vmem:[%s9 + $0x30] sm:$0xff] %vm927, %v879
  %935 = vst.msk [vmem:[%s9 + $0x38] sm:$0xff] %vm927, %v884
  %936 = vst.msk [vmem:[%s9 + $0x40] sm:$0xff] %vm927, %v889
  %937 = vst.msk [vmem:[%s9 + $0x48] sm:$0xff] %vm927, %v894
  %938 = vst.msk [vmem:[%s9 + $0x50] sm:$0xff] %vm927, %v899
  %939 = vst.msk [vmem:[%s9 + $0x58] sm:$0xff] %vm927, %v904
  %940 = vst.msk [vmem:[%s9 + $0x60] sm:$0xff] %vm927, %v909
  %941 = vst.msk [vmem:[%s9 + $0x68] sm:$0xff] %vm927, %v914
  %942 = vst.msk [vmem:[%s9 + $0x70] sm:$0xff] %vm927, %v919
  %943 = vst.msk [vmem:[%s9 + $0x78] sm:$0xff] %vm927, %v924
  // Predicated region
  $region38: #{tpu_custom_call.1} parent=0 // pred_check
    _
  $region39: #{tpu_custom_call.1} parent=0 // pred_check_branch
    %945 = sbr.rel (0) target = $region41
  $region40: #{tpu_custom_call.1} parent=0 // pred_region
    _
  $region41: #{tpu_custom_call.1} parent=0 // pred_fallthru
    _
  // Predicated region
  $region42: #{tpu_custom_call.1} parent=0 // pred_check
    _
  $region43: #{tpu_custom_call.1} parent=0 // pred_check_branch
    %947 = sbr.rel (0) target = $region45
  $region44: #{tpu_custom_call.1} parent=0 // pred_region
    _
  $region45: #{tpu_custom_call.1} parent=0 // pred_fallthru
    _

</llo_original>
